<compile_context>
chip_gen: v6e
topology: v6e:2x2x1
jax: 0.10.0
libtpu: 0.0.40
codegen_flags: <defaults>
</compile_context>

<pallas_src>
import functools

import jax
import jax.numpy as jnp
from jax.experimental import pallas as pl
from jax.experimental.pallas import tpu as pltpu


def _edge_kernel(x_ref, o_ref, *, abs_inv_scale):
    # x_ref: (1, C, H, W) block for one batch element; o_ref: (1, 1, H, W).
    _, _, H, W = x_ref.shape
    f32 = jnp.float32

    # Start from zero, then accumulate the gradX / gradY contributions in place
    # (mirrors the PyTorch `gradX[...] += ...` structure exactly).
    o_ref[0, 0, :, :] = jnp.zeros((H, W), o_ref.dtype)

    if H > 1:
        # Channel-summed |img[h+1] - img[h]| -> (H-1, W).  |a/s - b/s| = |a-b|*|1/s|.
        hi = x_ref[0, :, 1:, :].astype(f32)
        lo = x_ref[0, :, :H - 1, :].astype(f32)
        dx = jnp.sum(jnp.abs(hi - lo), axis=0) * f32(abs_inv_scale)

        # PyTorch: gradX[:-1] += dx ; gradX[1:] += dx ; gradX[1:-1] /= 2
        #  -> contribution of dx[h] to row h     is halved unless h == 0
        #  -> contribution of dx[h] to row h + 1 is halved unless h == H-2
        r = jax.lax.broadcasted_iota(jnp.int32, (H - 1, W), 0)
        w_top = jnp.where(r > 0, f32(0.5), f32(1.0))
        w_bot = jnp.where(r < H - 2, f32(0.5), f32(1.0))
        o_ref[0, 0, :H - 1, :] += (dx * w_top).astype(o_ref.dtype)
        o_ref[0, 0, 1:, :] += (dx * w_bot).astype(o_ref.dtype)

    if W > 1:
        rt = x_ref[0, :, :, 1:].astype(f32)
        lf = x_ref[0, :, :, :W - 1].astype(f32)
        dy = jnp.sum(jnp.abs(rt - lf), axis=0) * f32(abs_inv_scale)   # (H, W-1)

        c = jax.lax.broadcasted_iota(jnp.int32, (H, W - 1), 1)
        w_lft = jnp.where(c > 0, f32(0.5), f32(1.0))
        w_rgt = jnp.where(c < W - 2, f32(0.5), f32(1.0))
        o_ref[0, 0, :, :W - 1] += (dy * w_lft).astype(o_ref.dtype)
        o_ref[0, 0, :, 1:] += (dy * w_rgt).astype(o_ref.dtype)


def edge_map(img, scale=1.0):
    """Pallas implementation of EdgeMap.forward.  img: (N, C, H, W) -> (N, 1, H, W)."""
    N, C, H, W = img.shape
    kernel = functools.partial(_edge_kernel, abs_inv_scale=abs(1.0 / float(scale)))
    # TODO(synk): for very large C*H*W per image, additionally tile H (with a
    # 1-row halo) to bound the per-step VMEM footprint on v7x's 64 MiB.
    return pl.pallas_call(
        kernel,
        out_shape=jax.ShapeDtypeStruct((N, 1, H, W), img.dtype),
        grid_spec=pltpu.PrefetchScalarGridSpec(
            num_scalar_prefetch=0,
            grid=(N,),
            in_specs=[pl.BlockSpec((1, C, H, W), lambda n: (n, 0, 0, 0))],
            out_specs=pl.BlockSpec((1, 1, H, W), lambda n: (n, 0, 0, 0)),
        ),
        compiler_params=pltpu.CompilerParams(
            dimension_semantics=("parallel",)),
    )(img)


def edge_map_ref(img, scale=1.0):
    """Pure-JAX reference matching the PyTorch EdgeMap module."""
    img = img / scale
    N, C, H, W = img.shape
    gradx = jnp.sum(jnp.abs(img[:, :, 1:, :] - img[:, :, :-1, :]), axis=1, keepdims=True)
    grady = jnp.sum(jnp.abs(img[:, :, :, 1:] - img[:, :, :, :-1]), axis=1, keepdims=True)
    gradX = jnp.zeros((N, 1, H, W), img.dtype)
    gradY = jnp.zeros((N, 1, H, W), img.dtype)
    gradX = gradX.at[:, :, :-1, :].add(gradx)
    gradX = gradX.at[:, :, 1:, :].add(gradx)
    gradX = gradX.at[:, :, 1:-1, :].multiply(0.5)
    gradY = gradY.at[:, :, :, :-1].add(grady)
    gradY = gradY.at[:, :, :, 1:].add(grady)
    gradY = gradY.at[:, :, :, 1:-1].multiply(0.5)
    return gradX + gradY


if __name__ == "__main__":
    batch, channels, spatial = 2, 4, 16
    scale = 1.0

    key = jax.random.PRNGKey(0)
    x = jax.random.normal(key, (batch, channels, spatial, spatial), jnp.float32)

    y = edge_map(x, scale=scale)
    y = jax.block_until_ready(y)

    y_ref = edge_map_ref(x, scale=scale)
    assert y.shape == (batch, 1, spatial, spatial), y.shape
    assert bool(jnp.all(jnp.isfinite(y)))
    assert bool(jnp.allclose(y, y_ref, atol=1e-5, rtol=1e-5)), \
        float(jnp.max(jnp.abs(y - y_ref)))
    print("KERNEL_OK")
</pallas_src>

<mosaic_0001>
module attributes {stable_mosaic.version = 11 : i64} {
  func.func @_edge_kernel(%arg0: i32, %arg1: memref<1x4x16x16xf32, #tpu.memory_space<vmem>>, %arg2: memref<1x1x16x16xf32, #tpu.memory_space<vmem>>) attributes {dimension_semantics = [#tpu.dimension_semantics<parallel>], iteration_bounds = array<i64: 2>, scalar_prefetch = 0 : i64, scratch_operands = 0 : i64, tpu.core_type = #tpu.core_type<tc>, window_params = [{transform_indices = @transform_0, window_bounds = array<i64: 1, 4, 16, 16>}, {transform_indices = @transform_1, window_bounds = array<i64: 1, 1, 16, 16>}]} {
    %cst = arith.constant 0.000000e+00 : f32
    %0 = vector.broadcast %cst : f32 to vector<16x16xf32>
    %c0 = arith.constant 0 : index
    %c0_0 = arith.constant 0 : index
    %c0_1 = arith.constant 0 : index
    %c0_2 = arith.constant 0 : index
    %1 = vector.load %arg2[%c0, %c0_0, %c0_1, %c0_2] : memref<1x1x16x16xf32, #tpu.memory_space<vmem>>, vector<1x1x16x16xf32>
    %2 = vector.shape_cast %1 : vector<1x1x16x16xf32> to vector<16x16xf32>
    %3 = vector.shape_cast %0 : vector<16x16xf32> to vector<1x1x16x16xf32>
    tpu.vector_store %arg2[%c0, %c0_0, %c0_1, %c0_2], %3 {strides = array<i32>} : memref<1x1x16x16xf32, #tpu.memory_space<vmem>>, vector<1x1x16x16xf32>,
    %c0_3 = arith.constant 0 : index
    %c0_4 = arith.constant 0 : index
    %c1 = arith.constant 1 : index
    %c0_5 = arith.constant 0 : index
    %4 = vector.load %arg1[%c0_3, %c0_4, %c1, %c0_5] : memref<1x4x16x16xf32, #tpu.memory_space<vmem>>, vector<1x4x15x16xf32>
    %5 = vector.shape_cast %4 : vector<1x4x15x16xf32> to vector<4x15x16xf32>
    %c0_6 = arith.constant 0 : index
    %c0_7 = arith.constant 0 : index
    %c0_8 = arith.constant 0 : index
    %c0_9 = arith.constant 0 : index
    %6 = vector.load %arg1[%c0_6, %c0_7, %c0_8, %c0_9] : memref<1x4x16x16xf32, #tpu.memory_space<vmem>>, vector<1x4x15x16xf32>
    %7 = vector.shape_cast %6 : vector<1x4x15x16xf32> to vector<4x15x16xf32>
    %8 = arith.subf %5, %7 : vector<4x15x16xf32>
    %9 = math.absf %8 : vector<4x15x16xf32>
    %cst_10 = arith.constant dense<0.000000e+00> : vector<15x16xf32>
    %10 = vector.multi_reduction <add>, %9, %cst_10 [0] : vector<4x15x16xf32> to vector<15x16xf32>
    %cst_11 = arith.constant 1.000000e+00 : f32
    %11 = vector.broadcast %cst_11 : f32 to vector<15x16xf32>
    %12 = arith.mulf %10, %11 : vector<15x16xf32>
    %13 = tpu.iota {dimensions = array<i32: 0>} : vector<15x16xi32>
    %c0_i32 = arith.constant 0 : i32
    %14 = vector.broadcast %c0_i32 : i32 to vector<15x16xi32>
    %15 = arith.cmpi sgt, %13, %14 : vector<15x16xi32>
    %cst_12 = arith.constant 5.000000e-01 : f32
    %cst_13 = arith.constant 1.000000e+00 : f32
    %16 = vector.broadcast %cst_12 : f32 to vector<15x16xf32>
    %17 = vector.broadcast %cst_13 : f32 to vector<15x16xf32>
    %18 = arith.select %15, %16, %17 : vector<15x16xi1>, vector<15x16xf32>
    %c14_i32 = arith.constant 14 : i32
    %19 = vector.broadcast %c14_i32 : i32 to vector<15x16xi32>
    %20 = arith.cmpi slt, %13, %19 : vector<15x16xi32>
    %cst_14 = arith.constant 5.000000e-01 : f32
    %cst_15 = arith.constant 1.000000e+00 : f32
    %21 = vector.broadcast %cst_14 : f32 to vector<15x16xf32>
    %22 = vector.broadcast %cst_15 : f32 to vector<15x16xf32>
    %23 = arith.select %20, %21, %22 : vector<15x16xi1>, vector<15x16xf32>
    %c0_16 = arith.constant 0 : index
    %c0_17 = arith.constant 0 : index
    %c0_18 = arith.constant 0 : index
    %c0_19 = arith.constant 0 : index
    %24 = vector.load %arg2[%c0_16, %c0_17, %c0_18, %c0_19] : memref<1x1x16x16xf32, #tpu.memory_space<vmem>>, vector<1x1x15x16xf32>
    %25 = vector.shape_cast %24 : vector<1x1x15x16xf32> to vector<15x16xf32>
    %26 = arith.mulf %12, %18 : vector<15x16xf32>
    %27 = arith.addf %25, %26 : vector<15x16xf32>
    %c0_20 = arith.constant 0 : index
    %c0_21 = arith.constant 0 : index
    %c0_22 = arith.constant 0 : index
    %c0_23 = arith.constant 0 : index
    %28 = vector.load %arg2[%c0_20, %c0_21, %c0_22, %c0_23] : memref<1x1x16x16xf32, #tpu.memory_space<vmem>>, vector<1x1x15x16xf32>
    %29 = vector.shape_cast %28 : vector<1x1x15x16xf32> to vector<15x16xf32>
    %30 = vector.shape_cast %27 : vector<15x16xf32> to vector<1x1x15x16xf32>
    tpu.vector_store %arg2[%c0_20, %c0_21, %c0_22, %c0_23], %30 {strides = array<i32>} : memref<1x1x16x16xf32, #tpu.memory_space<vmem>>, vector<1x1x15x16xf32>,
    %c0_24 = arith.constant 0 : index
    %c0_25 = arith.constant 0 : index
    %c1_26 = arith.constant 1 : index
    %c0_27 = arith.constant 0 : index
    %31 = vector.load %arg2[%c0_24, %c0_25, %c1_26, %c0_27] : memref<1x1x16x16xf32, #tpu.memory_space<vmem>>, vector<1x1x15x16xf32>
    %32 = vector.shape_cast %31 : vector<1x1x15x16xf32> to vector<15x16xf32>
    %33 = arith.mulf %12, %23 : vector<15x16xf32>
    %34 = arith.addf %32, %33 : vector<15x16xf32>
    %c0_28 = arith.constant 0 : index
    %c0_29 = arith.constant 0 : index
    %c1_30 = arith.constant 1 : index
    %c0_31 = arith.constant 0 : index
    %35 = vector.load %arg2[%c0_28, %c0_29, %c1_30, %c0_31] : memref<1x1x16x16xf32, #tpu.memory_space<vmem>>, vector<1x1x15x16xf32>
    %36 = vector.shape_cast %35 : vector<1x1x15x16xf32> to vector<15x16xf32>
    %37 = vector.shape_cast %34 : vector<15x16xf32> to vector<1x1x15x16xf32>
    tpu.vector_store %arg2[%c0_28, %c0_29, %c1_30, %c0_31], %37 {strides = array<i32>} : memref<1x1x16x16xf32, #tpu.memory_space<vmem>>, vector<1x1x15x16xf32>,
    %c0_32 = arith.constant 0 : index
    %c0_33 = arith.constant 0 : index
    %c0_34 = arith.constant 0 : index
    %c1_35 = arith.constant 1 : index
    %38 = vector.load %arg1[%c0_32, %c0_33, %c0_34, %c1_35] : memref<1x4x16x16xf32, #tpu.memory_space<vmem>>, vector<1x4x16x15xf32>
    %39 = vector.shape_cast %38 : vector<1x4x16x15xf32> to vector<4x16x15xf32>
    %c0_36 = arith.constant 0 : index
    %c0_37 = arith.constant 0 : index
    %c0_38 = arith.constant 0 : index
    %c0_39 = arith.constant 0 : index
    %40 = vector.load %arg1[%c0_36, %c0_37, %c0_38, %c0_39] : memref<1x4x16x16xf32, #tpu.memory_space<vmem>>, vector<1x4x16x15xf32>
    %41 = vector.shape_cast %40 : vector<1x4x16x15xf32> to vector<4x16x15xf32>
    %42 = arith.subf %39, %41 : vector<4x16x15xf32>
    %43 = math.absf %42 : vector<4x16x15xf32>
    %cst_40 = arith.constant dense<0.000000e+00> : vector<16x15xf32>
    %44 = vector.multi_reduction <add>, %43, %cst_40 [0] : vector<4x16x15xf32> to vector<16x15xf32>
    %cst_41 = arith.constant 1.000000e+00 : f32
    %45 = vector.broadcast %cst_41 : f32 to vector<16x15xf32>
    %46 = arith.mulf %44, %45 : vector<16x15xf32>
    %47 = tpu.iota {dimensions = array<i32: 1>} : vector<16x15xi32>
    %c0_i32_42 = arith.constant 0 : i32
    %48 = vector.broadcast %c0_i32_42 : i32 to vector<16x15xi32>
    %49 = arith.cmpi sgt, %47, %48 : vector<16x15xi32>
    %cst_43 = arith.constant 5.000000e-01 : f32
    %cst_44 = arith.constant 1.000000e+00 : f32
    %50 = vector.broadcast %cst_43 : f32 to vector<16x15xf32>
    %51 = vector.broadcast %cst_44 : f32 to vector<16x15xf32>
    %52 = arith.select %49, %50, %51 : vector<16x15xi1>, vector<16x15xf32>
    %c14_i32_45 = arith.constant 14 : i32
    %53 = vector.broadcast %c14_i32_45 : i32 to vector<16x15xi32>
    %54 = arith.cmpi slt, %47, %53 : vector<16x15xi32>
    %cst_46 = arith.constant 5.000000e-01 : f32
    %cst_47 = arith.constant 1.000000e+00 : f32
    %55 = vector.broadcast %cst_46 : f32 to vector<16x15xf32>
    %56 = vector.broadcast %cst_47 : f32 to vector<16x15xf32>
    %57 = arith.select %54, %55, %56 : vector<16x15xi1>, vector<16x15xf32>
    %c0_48 = arith.constant 0 : index
    %c0_49 = arith.constant 0 : index
    %c0_50 = arith.constant 0 : index
    %c0_51 = arith.constant 0 : index
    %58 = vector.load %arg2[%c0_48, %c0_49, %c0_50, %c0_51] : memref<1x1x16x16xf32, #tpu.memory_space<vmem>>, vector<1x1x16x15xf32>
    %59 = vector.shape_cast %58 : vector<1x1x16x15xf32> to vector<16x15xf32>
    %60 = arith.mulf %46, %52 : vector<16x15xf32>
    %61 = arith.addf %59, %60 : vector<16x15xf32>
    %c0_52 = arith.constant 0 : index
    %c0_53 = arith.constant 0 : index
    %c0_54 = arith.constant 0 : index
    %c0_55 = arith.constant 0 : index
    %62 = vector.load %arg2[%c0_52, %c0_53, %c0_54, %c0_55] : memref<1x1x16x16xf32, #tpu.memory_space<vmem>>, vector<1x1x16x15xf32>
    %63 = vector.shape_cast %62 : vector<1x1x16x15xf32> to vector<16x15xf32>
    %64 = vector.shape_cast %61 : vector<16x15xf32> to vector<1x1x16x15xf32>
    tpu.vector_store %arg2[%c0_52, %c0_53, %c0_54, %c0_55], %64 {strides = array<i32>} : memref<1x1x16x16xf32, #tpu.memory_space<vmem>>, vector<1x1x16x15xf32>,
    %c0_56 = arith.constant 0 : index
    %c0_57 = arith.constant 0 : index
    %c0_58 = arith.constant 0 : index
    %c1_59 = arith.constant 1 : index
    %65 = vector.load %arg2[%c0_56, %c0_57, %c0_58, %c1_59] : memref<1x1x16x16xf32, #tpu.memory_space<vmem>>, vector<1x1x16x15xf32>
    %66 = vector.shape_cast %65 : vector<1x1x16x15xf32> to vector<16x15xf32>
    %67 = arith.mulf %46, %57 : vector<16x15xf32>
    %68 = arith.addf %66, %67 : vector<16x15xf32>
    %c0_60 = arith.constant 0 : index
    %c0_61 = arith.constant 0 : index
    %c0_62 = arith.constant 0 : index
    %c1_63 = arith.constant 1 : index
    %69 = vector.load %arg2[%c0_60, %c0_61, %c0_62, %c1_63] : memref<1x1x16x16xf32, #tpu.memory_space<vmem>>, vector<1x1x16x15xf32>
    %70 = vector.shape_cast %69 : vector<1x1x16x15xf32> to vector<16x15xf32>
    %71 = vector.shape_cast %68 : vector<16x15xf32> to vector<1x1x16x15xf32>
    tpu.vector_store %arg2[%c0_60, %c0_61, %c0_62, %c1_63], %71 {strides = array<i32>} : memref<1x1x16x16xf32, #tpu.memory_space<vmem>>, vector<1x1x16x15xf32>,
    return
  }
  func.func @transform_0(%arg0: i32) -> (i32, i32, i32, i32) {
    %c0_i32 = arith.constant 0 : i32
    %c0_i32_0 = arith.constant 0 : i32
    %c0_i32_1 = arith.constant 0 : i32
    %c0_i32_2 = arith.constant 0 : i32
    return %arg0, %c0_i32, %c0_i32_0, %c0_i32_1 : i32, i32, i32, i32
  }
  func.func @transform_1(%arg0: i32) -> (i32, i32, i32, i32) {
    %c0_i32 = arith.constant 0 : i32
    %c0_i32_0 = arith.constant 0 : i32
    %c0_i32_1 = arith.constant 0 : i32
    %c0_i32_2 = arith.constant 0 : i32
    return %arg0, %c0_i32, %c0_i32_0, %c0_i32_1 : i32, i32, i32, i32
  }
}

</mosaic_0001>

<llo_original>
// kernel: tpu_custom_call.1
$region0: #{tpu_custom_call.1}
  #allocation0 [shape = 'u32[]', space=smem, size = 0x4, offset = 0x4, fixed_abs, tag = 'smem constant byte address 0x4 - core index']
  #allocation1 [shape = 'u32[144,128]{1,0:T(1,128)}', space=vmem, size = 0x12000, scoped, tag = 'internal scratch']
  %s0 = inlined_call_operand.hbm [shape: f32[2,4,16,16], index: 0, kind: input, shape index: {}]
  %s1 = inlined_call_operand.hbm [shape: f32[2,1,16,16], index: 1, kind: output, shape index: {}]
  %s2 = sld [smem:[#allocation0]]
  $region41: #{tpu_custom_call.1} parent=0
    _
  %s4 = ssub.s32 1, %s2
  %s5 = scalar_select 0, %s4, %s2
  $region1: #{tpu_custom_call.1} parent=0
    #allocation2 [shape = 'u8[65536]{0}', space=vmem, size = 0x10000, scoped, tag = 'input window, operand 0']
    #allocation3 [shape = 's32[2]{0}', space=sflag, size = 0x8, scoped, tag = 'scoped memory for tpu_custom_call.1']
    #allocation4 [shape = 's32[2]{0}', space=sflag, size = 0x8, scoped, tag = 'scoped memory for tpu_custom_call.1']
    #allocation5 [shape = 'u8[16384]{0}', space=vmem, size = 0x4000, scoped, tag = 'output window, operand 0']
    %6 = vsyncpa [#allocation3], 0
    %s7 = scalar_lea.sflag [#allocation3], 1
    %8 = vsyncpa %s7, 0
    %9 = vsyncpa [#allocation4], 0
    %s10 = scalar_lea.sflag [#allocation4], 1
    %11 = vsyncpa %s10, 0
    loop: start=0, step=1, limit=4
    $region2: #{tpu_custom_call.1} parent=1 // loop_pre_header
      _
    $region3: #{tpu_custom_call.1} parent=1 // loop_header
      %s13 = sphi 0, %s17
      %p14 = scmp.ge.s32.totalorder %s13, 4
      %s23 = sphi 0, %s25
      %s26 = sphi 0, %s23
      %s27 = sphi 0, %s26
      %s43 = sphi 0, %s27
      %s49 = sphi 0, %s51
      %s52 = sphi 0, %s49
      %s53 = sphi 0, %s52
      %s69 = sphi 0, %s53
    $region4: #{tpu_custom_call.1} parent=1 // loop_header_branch
      %16 = sbr.rel (%p14) target = $region8
    $region5: #{tpu_custom_call.1} parent=1 // loop_body
      %s18 = ssub.s32 %s13, 1
      %s19 = ssub.s32 %s13, 2
      %s20 = sadd.s32 %s13, 1
      %s21 = ssub.s32 %s13, %s20
      %p22 = scmp.eq.s32.totalorder %s21, 0
      %s24 = sadd.s32 %s23, 1
      %s25 = scalar_select %p22, %s23, %s24
      %p28 = pneg %p22
      %p29 = scmp.eq.s32.totalorder %s13, 1
      %p30 = por %p28, %p29
      %p31 = scmp.ne.s32.totalorder %s23, %s26
      %p32 = scmp.eq.s32.totalorder %s13, 0
      %p33 = por %p31, %p32
      %p34 = scmp.ne.s32.totalorder %s23, %s26
      %p35 = scmp.eq.s32.totalorder %s18, 1
      %p36 = por %p34, %p35
      %p37 = scmp.ne.s32.totalorder %s26, %s27
      %p38 = scmp.eq.s32.totalorder %s18, 0
      %p39 = por %p37, %p38
      %p40 = scmp.ne.s32.totalorder %s26, %s27
      %p41 = scmp.eq.s32.totalorder %s19, 1
      %p42 = por %p40, %p41
      %p44 = scmp.ne.s32.totalorder %s27, %s43
      %p45 = scmp.eq.s32.totalorder %s19, 0
      %p46 = por %p44, %p45
      %s47 = ssub.s32 %s13, %s20
      %p48 = scmp.eq.s32.totalorder %s47, 0
      %s50 = sadd.s32 %s49, 1
      %s51 = scalar_select %p48, %s49, %s50
      %p54 = pneg %p48
      %p55 = scmp.eq.s32.totalorder %s13, 1
      %p56 = por %p54, %p55
      %p57 = scmp.ne.s32.totalorder %s49, %s52
      %p58 = scmp.eq.s32.totalorder %s13, 0
      %p59 = por %p57, %p58
      %p60 = scmp.ne.s32.totalorder %s49, %s52
      %p61 = scmp.eq.s32.totalorder %s18, 1
      %p62 = por %p60, %p61
      %p63 = scmp.ne.s32.totalorder %s52, %s53
      %p64 = scmp.eq.s32.totalorder %s18, 0
      %p65 = por %p63, %p64
      %p66 = scmp.ne.s32.totalorder %s52, %s53
      %p67 = scmp.eq.s32.totalorder %s19, 1
      %p68 = por %p66, %p67
      %p70 = scmp.ne.s32.totalorder %s53, %s69
      %p71 = scmp.eq.s32.totalorder %s19, 0
      %p72 = por %p70, %p71
      %p73 = scmp.le.s32.totalorder 1, %s13
      %p74 = scmp.lt.s32.totalorder %s13, 3
      %p75 = pnand %p73, %p74
      %p76 = pneg %p75
      // Predicated region
      $region9: #{tpu_custom_call.1} parent=5 // pred_check
        _
      $region10: #{tpu_custom_call.1} parent=5 // pred_check_branch
        %78 = sbr.rel (%p75) target = $region12
      $region11: #{tpu_custom_call.1} parent=5 // pred_region
        %s79 = ssub.s32 %s13, 1
      $region12: #{tpu_custom_call.1} parent=5 // pred_fallthru
        _
      %p80 = scmp.lt.s32.totalorder %s13, 2
      // Predicated region
      $region13: #{tpu_custom_call.1} parent=5 // pred_check
        %p81 = pneg %p80
      $region14: #{tpu_custom_call.1} parent=5 // pred_check_branch
        %83 = sbr.rel (%p81) target = $region16
      $region15: #{tpu_custom_call.1} parent=5 // pred_region
        // Predicated region
        $region17: #{tpu_custom_call.1} parent=15 // pred_check
          %p84 = pneg %p33
        $region18: #{tpu_custom_call.1} parent=15 // pred_check_branch
          %86 = sbr.rel (%p84) target = $region20
        $region19: #{tpu_custom_call.1} parent=15 // pred_region
          %s87 = sand.u32 %s23, 1
          %s88 = scalar_lea.sflag [#allocation3], %s87
          %s89 = sand.u32 %s23, 1
          %s90 = smul.addr %s89, 64
          %s91 = scalar_lea.vmem [#allocation2], %s90
          %s93 = ssub.s32 1024, 1024
          %94 = vsyncadd %s88, %s93
          %s95 = smul.addr %s13, 8
          %s96 = smul.addr %s95, 128
          %s97 = scalar_lea.hbm %s0, %s96
          %s98 = sshll.u32 %s91, 4
          %s99 = int_to_ptr.vmem [resolvable:$true] %s98
          %104 = dma.hbm_to_vmem [thread:$0]  %s97, 1024, %s99, %s88, 128, 128, 8
        $region20: #{tpu_custom_call.1} parent=15 // pred_fallthru
          _
      $region16: #{tpu_custom_call.1} parent=5 // pred_fallthru
        _
      %p105 = scmp.le.s32.totalorder 1, %s13
      %p106 = scmp.lt.s32.totalorder %s13, 3
      %p107 = pnand %p105, %p106
      %p108 = pneg %p107
      // Predicated region
      $region21: #{tpu_custom_call.1} parent=5 // pred_check
        _
      $region22: #{tpu_custom_call.1} parent=5 // pred_check_branch
        %110 = sbr.rel (%p107) target = $region24
      $region23: #{tpu_custom_call.1} parent=5 // pred_region
        %s111 = ssub.s32 %s13, 1
        %s112 = sand.u32 %s26, 1
        %s113 = scalar_lea.sflag [#allocation3], %s112
        %s114 = sand.u32 %s26, 1
        %s115 = smul.addr %s114, 64
        %s116 = scalar_lea.vmem [#allocation2], %s115
        // Predicated region
        $region25: #{tpu_custom_call.1} parent=23 // pred_check
          %p117 = pneg %p39
        $region26: #{tpu_custom_call.1} parent=23 // pred_check_branch
          %119 = sbr.rel (%p117) target = $region28
        $region27: #{tpu_custom_call.1} parent=23 // pred_region
          %120 = dma.done %s113, 1024
        $region28: #{tpu_custom_call.1} parent=23 // pred_fallthru
          _
        %s121 = sand.u32 %s26, 1
        %s122 = scalar_lea.sflag [#allocation3], %s121
        %s123 = sand.u32 %s26, 1
        %s124 = smul.addr %s123, 64
        %s125 = scalar_lea.vmem [#allocation2], %s124
        %p126 = pneg %p39
        %p127 = pneg %p36
        %p128 = pneg %p65
        %p129 = pneg %p62
        %s130 = sand.u32 %s52, 1
        %s131 = scalar_lea.sflag [#allocation4], %s130
        %s132 = sand.u32 %s52, 1
        %s133 = smul.addr %s132, 16
        %s134 = scalar_lea.vmem [#allocation5], %s133
        %vm135 = vcmask 130048
        %136 = vst.msk [vmem:[%s134] sm:$0xff] %vm135, 0.0
        %137 = vst.msk [vmem:[%s134 + $0x8] sm:$0xff] %vm135, 0.0
        %v138 = vld [vmem:[%s116 + $0x1] sm:$0xff]
        %v139 = vld [vmem:[%s116 + $0x9] sm:$0x7f]
        %v140 = vld [vmem:[%s116 + $0x11] sm:$0xff]
        %v141 = vld [vmem:[%s116 + $0x19] sm:$0x7f]
        %v142 = vld [vmem:[%s116 + $0x21] sm:$0xff]
        %v143 = vld [vmem:[%s116 + $0x29] sm:$0x7f]
        %v144 = vld [vmem:[%s116 + $0x31] sm:$0xff]
        %v145 = vld [vmem:[%s116 + $0x39] sm:$0x7f]
        %v146 = vld [vmem:[%s116] sm:$0xff]
        %v147 = vld [vmem:[%s116 + $0x8] sm:$0x7f]
        %v148 = vld [vmem:[%s116 + $0x10] sm:$0xff]
        %v149 = vld [vmem:[%s116 + $0x18] sm:$0x7f]
        %v150 = vld [vmem:[%s116 + $0x20] sm:$0xff]
        %v151 = vld [vmem:[%s116 + $0x28] sm:$0x7f]
        %v152 = vld [vmem:[%s116 + $0x30] sm:$0xff]
        %v153 = vld [vmem:[%s116 + $0x38] sm:$0x7f]
        %v154 = vsub.f32 %v138, %v146
        %v155 = vsub.f32 %v139, %v147
        %v156 = vsub.f32 %v140, %v148
        %v157 = vsub.f32 %v141, %v149
        %v158 = vsub.f32 %v142, %v150
        %v159 = vsub.f32 %v143, %v151
        %v160 = vsub.f32 %v144, %v152
        %v161 = vsub.f32 %v145, %v153
        %v162 = vand.u32 2147483647, %v154
        %v163 = vand.u32 2147483647, %v155
        %v164 = vand.u32 2147483647, %v156
        %v165 = vand.u32 2147483647, %v157
        %v166 = vand.u32 2147483647, %v158
        %v167 = vand.u32 2147483647, %v159
        %v168 = vand.u32 2147483647, %v160
        %v169 = vand.u32 2147483647, %v161
        %v170 = vsel %vm135, %v162, 0.0
        %v171 = vsel %vm135, %v164, 0.0
        %v172 = vadd.f32 %v170, %v171
        %v173 = vsel %vm135, %v166, 0.0
        %v174 = vadd.f32 %v172, %v173
        %v175 = vsel %vm135, %v168, 0.0
        %v176 = vadd.f32 %v174, %v175
        %vm177 = vcmask 129024
        %v178 = vsel %vm177, %v163, 0.0
        %v179 = vsel %vm177, %v165, 0.0
        %v180 = vadd.f32 %v178, %v179
        %v181 = vsel %vm177, %v167, 0.0
        %v182 = vadd.f32 %v180, %v181
        %v183 = vsel %vm177, %v169, 0.0
        %v184 = vadd.f32 %v182, %v183
        %v185 = vlaneseq
        %v186 = vshrl.u32 %v185, 7
        %v187 = vadd.s32 %v186, 8
        %vm188 = vcmp.gt.s32.totalorder %v186, 0
        %vm189 = vcmp.gt.s32.totalorder %v187, 0
        %v190 = vsel %vm188, 0.5, 1.0
        %v191 = vsel %vm189, 0.5, 1.0
        %vm192 = vcmp.lt.s32.totalorder %v186, 14
        %vm193 = vcmp.lt.s32.totalorder %v187, 14
        %v194 = vsel %vm192, 0.5, 1.0
        %v195 = vsel %vm193, 0.5, 1.0
        %v196 = vld [vmem:[%s134] sm:$0xff]
        %v197 = vld [vmem:[%s134 + $0x8] sm:$0x7f]
        %v198 = vmul.f32 %v176, %v190
        %v199 = vmul.f32 %v184, %v191
        %v200 = vadd.f32 %v196, %v198
        %v201 = vadd.f32 %v197, %v199
        %202 = vst.msk [vmem:[%s134] sm:$0xff] %vm135, %v200
        %203 = vst.msk [vmem:[%s134 + $0x8] sm:$0x7f] %vm177, %v201
        %v204 = vld [vmem:[%s134 + $0x1] sm:$0xff]
        %v205 = vld [vmem:[%s134 + $0x9] sm:$0x7f]
        %v206 = vmul.f32 %v176, %v194
        %v207 = vmul.f32 %v184, %v195
        %v208 = vadd.f32 %v204, %v206
        %v209 = vadd.f32 %v205, %v207
        %210 = vst.msk [vmem:[%s134 + $0x1] sm:$0xff] %vm135, %v208
        %211 = vst.msk [vmem:[%s134 + $0x9] sm:$0x7f] %vm177, %v209
        %v212 = vld [vmem:[%s116] sm:$0xff]
        %v213 = vld [vmem:[%s116 + $0x8] sm:$0xff]
        %v214 = vld [vmem:[%s116 + $0x10] sm:$0xff]
        %v215 = vld [vmem:[%s116 + $0x18] sm:$0xff]
        %v216 = vld [vmem:[%s116 + $0x20] sm:$0xff]
        %v217 = vld [vmem:[%s116 + $0x28] sm:$0xff]
        %v218 = vld [vmem:[%s116 + $0x30] sm:$0xff]
        %v219 = vld [vmem:[%s116 + $0x38] sm:$0xff]
        %228 = vrot.lane.b32.xlu0 %v212, 1
        %v229 = vpop.permute.xlu0 %228
        %230 = vrot.lane.b32.xlu0 %v213, 1
        %v231 = vpop.permute.xlu0 %230
        %232 = vrot.lane.b32.xlu0 %v214, 1
        %v233 = vpop.permute.xlu0 %232
        %234 = vrot.lane.b32.xlu0 %v215, 1
        %v235 = vpop.permute.xlu0 %234
        %236 = vrot.lane.b32.xlu0 %v216, 1
        %v237 = vpop.permute.xlu0 %236
        %238 = vrot.lane.b32.xlu0 %v217, 1
        %v239 = vpop.permute.xlu0 %238
        %240 = vrot.lane.b32.xlu0 %v218, 1
        %v241 = vpop.permute.xlu0 %240
        %242 = vrot.lane.b32.xlu0 %v219, 1
        %v243 = vpop.permute.xlu0 %242
        %v252 = vsub.f32 %v212, %v229
        %v253 = vsub.f32 %v213, %v231
        %v254 = vsub.f32 %v214, %v233
        %v255 = vsub.f32 %v215, %v235
        %v256 = vsub.f32 %v216, %v237
        %v257 = vsub.f32 %v217, %v239
        %v258 = vsub.f32 %v218, %v241
        %v259 = vsub.f32 %v219, %v243
        %v260 = vand.u32 2147483647, %v252
        %v261 = vand.u32 2147483647, %v253
        %v262 = vand.u32 2147483647, %v254
        %v263 = vand.u32 2147483647, %v255
        %v264 = vand.u32 2147483647, %v256
        %v265 = vand.u32 2147483647, %v257
        %v266 = vand.u32 2147483647, %v258
        %v267 = vand.u32 2147483647, %v259
        %vm268 = vcmask 130056
        %v269 = vsel %vm268, %v260, 0.0
        %v270 = vsel %vm268, %v262, 0.0
        %v271 = vadd.f32 %v269, %v270
        %v272 = vsel %vm268, %v264, 0.0
        %v273 = vadd.f32 %v271, %v272
        %v274 = vsel %vm268, %v266, 0.0
        %v275 = vadd.f32 %v273, %v274
        %v276 = vsel %vm268, %v261, 0.0
        %v277 = vsel %vm268, %v263, 0.0
        %v278 = vadd.f32 %v276, %v277
        %v279 = vsel %vm268, %v265, 0.0
        %v280 = vadd.f32 %v278, %v279
        %v281 = vsel %vm268, %v267, 0.0
        %v282 = vadd.f32 %v280, %v281
        %v283 = vlaneseq
        %v284 = vand.u32 %v283, 127
        %vm285 = vcmp.gt.s32.totalorder %v284, 0
        %v286 = vsel %vm285, 0.5, 1.0
        %vm287 = vcmp.lt.s32.totalorder %v284, 14
        %v288 = vsel %vm287, 0.5, 1.0
        %v289 = vld [vmem:[%s134] sm:$0xff]
        %v290 = vld [vmem:[%s134 + $0x8] sm:$0xff]
        %292 = vrot.lane.b32.xlu0 %v286, 1
        %v293 = vpop.permute.xlu0 %292
        %v295 = vmul.f32 %v275, %v293
        %v296 = vmul.f32 %v282, %v293
        %299 = vrot.lane.b32.xlu0 %v295, 127
        %v300 = vpop.permute.xlu0 %299
        %301 = vrot.lane.b32.xlu0 %v296, 127
        %v302 = vpop.permute.xlu0 %301
        %v305 = vadd.f32 %v289, %v300
        %v306 = vadd.f32 %v290, %v302
        %vm307 = vcmask 121856
        %308 = vst.msk [vmem:[%s134] sm:$0xff] %vm307, %v305
        %309 = vst.msk [vmem:[%s134 + $0x8] sm:$0xff] %vm307, %v306
        %v310 = vld [vmem:[%s134] sm:$0xff]
        %v311 = vld [vmem:[%s134 + $0x8] sm:$0xff]
        %313 = vrot.lane.b32.xlu0 %v288, 1
        %v314 = vpop.permute.xlu0 %313
        %v316 = vmul.f32 %v275, %v314
        %v317 = vmul.f32 %v282, %v314
        %v318 = vadd.f32 %v310, %v316
        %v319 = vadd.f32 %v311, %v317
        %320 = vst.msk [vmem:[%s134] sm:$0xff] %vm268, %v318
        %321 = vst.msk [vmem:[%s134 + $0x8] sm:$0xff] %vm268, %v319
        %s322 = sand.u32 %s52, 1
        %s323 = scalar_lea.sflag [#allocation4], %s322
        %s324 = sand.u32 %s52, 1
        %s325 = smul.addr %s324, 16
        %s326 = scalar_lea.vmem [#allocation5], %s325
        // Predicated region
        $region29: #{tpu_custom_call.1} parent=23 // pred_check
          %p327 = pneg %p62
        $region30: #{tpu_custom_call.1} parent=23 // pred_check_branch
          %329 = sbr.rel (%p327) target = $region32
        $region31: #{tpu_custom_call.1} parent=23 // pred_region
          %s331 = ssub.s32 256, 256
          %332 = vsyncadd %s323, %s331
          %s333 = smul.addr %s18, 2
          %s334 = smul.addr %s333, 128
          %s335 = scalar_lea.hbm %s1, %s334
          %s336 = sshll.u32 %s326, 4
          %s337 = int_to_ptr.vmem [resolvable:$true] %s336
          %342 = dma.vmem_to_hbm [thread:$0]  %s337, 256, %s335, %s323, 128, 128, 8
        $region32: #{tpu_custom_call.1} parent=23 // pred_fallthru
          _
      $region24: #{tpu_custom_call.1} parent=5 // pred_fallthru
        _
      %p343 = scmp.le.s32.totalorder 2, %s13
      // Predicated region
      $region33: #{tpu_custom_call.1} parent=5 // pred_check
        %p344 = pneg %p343
      $region34: #{tpu_custom_call.1} parent=5 // pred_check_branch
        %346 = sbr.rel (%p344) target = $region36
      $region35: #{tpu_custom_call.1} parent=5 // pred_region
        %s347 = ssub.s32 %s13, 2
        // Predicated region
        $region37: #{tpu_custom_call.1} parent=35 // pred_check
          %p348 = pneg %p68
        $region38: #{tpu_custom_call.1} parent=35 // pred_check_branch
          %350 = sbr.rel (%p348) target = $region40
        $region39: #{tpu_custom_call.1} parent=35 // pred_region
          %s351 = sand.u32 %s53, 1
          %s352 = scalar_lea.sflag [#allocation4], %s351
          %s353 = sand.u32 %s53, 1
          %s354 = smul.addr %s353, 16
          %s355 = scalar_lea.vmem [#allocation5], %s354
          %356 = dma.done %s352, 256
        $region40: #{tpu_custom_call.1} parent=35 // pred_fallthru
          _
      $region36: #{tpu_custom_call.1} parent=5 // pred_fallthru
        _
    $region6: #{tpu_custom_call.1} parent=1 // loop_footer
      %s17 = sadd.s32 1, %s13
    $region7: #{tpu_custom_call.1} parent=1 // loop_footer_branch
      %12 = sbr.rel target = $region3
    $region8: #{tpu_custom_call.1} parent=1 // loop_exit
      _
    %357 = vsyncpa [#allocation3], 1
    %s358 = scalar_lea.sflag [#allocation3], 1
    %359 = vsyncpa %s358, 1
    %360 = vsyncpa [#allocation4], 1
    %s361 = scalar_lea.sflag [#allocation4], 1
    %362 = vsyncpa %s361, 1

</llo_original>
